<compile_context>
chip_gen: v6e
topology: v6e:2x2x1
jax: 0.10.0
libtpu: 0.0.40
codegen_flags: <defaults>
</compile_context>

<pallas_src>
import functools
import math

import jax
import jax.numpy as jnp
from jax import lax
from jax.experimental import pallas as pl
from jax.experimental.pallas import tpu as pltpu


def _iq_loss_tile_kernel(p_ref, t_ref, out_ref, *, alpha, beta, gamma):
    # (bm, C) tiles of interleaved I/Q data: even lanes hold I, odd lanes Q.
    p = p_ref[...].astype(jnp.float32)
    t = t_ref[...].astype(jnp.float32)
    bm, C = p.shape

    # Pair partner via one lane rotation: partner[l] = x[(l + 1) % C]
    # (jnp.roll semantics; shift C-1 == shift -1).  At even lanes:
    # own = I_k, partner = Q_k of the same IQ sample.  (XLU slot - free-ish.)
    pp = pltpu.roll(p, C - 1, axis=1)
    tp = pltpu.roll(t, C - 1, axis=1)

    # Component-wise loss: every lane contributes (t - p)^2 exactly once.
    d = t - p
    comp = d * d

    # Squared amplitudes (meaningful at even lanes; odd lanes masked later).
    r2_p = p * p + pp * pp
    r2_t = t * t + tp * tp

    # Select-free guarded rsqrt (EUP slot).  Clamping keeps inv_ap*inv_at
    # finite in f32 and keeps exact zeros (padding) contributing exactly 0:
    # a = r2 * inv = 0 and cross = 0 when I == Q == 0.
    TINY = 1e-30
    inv_ap = lax.rsqrt(jnp.maximum(r2_p, TINY))
    inv_at = lax.rsqrt(jnp.maximum(r2_t, TINY))

    # Amplitude loss: a = r2 * rsqrt(r2) = sqrt(r2).
    a_p = r2_p * inv_ap
    a_t = r2_t * inv_at
    da = a_t - a_p
    amp = da * da

    # Phase loss via the cross-product identity:
    #   sin(theta_t - theta_p) = (Q_t*I_p - I_t*Q_p) / (A_t * A_p)
    cross = tp * p - t * pp
    pd = cross * (inv_ap * inv_at)
    phase = pd * pd

    # Even-lane beta/gamma pattern rows, built once per tile on a (1, C)
    # shape (a few vregs) instead of a per-element iota/mod/cmp/select over
    # the whole (bm, C) tile.  Broadcasts over sublanes in the multiplies.
    lane = lax.broadcasted_iota(jnp.int32, (1, C), 1)
    even = (lane % 2) == 0
    beta_row = jnp.where(even, jnp.float32(beta), jnp.float32(0.0))
    gamma_row = jnp.where(even, jnp.float32(gamma), jnp.float32(0.0))

    weighted = alpha * comp + amp * beta_row + phase * gamma_row
    tile_sum = jnp.sum(weighted)

    # Lane-dense (unmasked) partial-sum block; wrapper reads [i, 0, 0].
    out_ref[...] = jnp.broadcast_to(tile_sum, (1, 8, 128))


def iq_component_wise_loss(pred, target, alpha=1.0, beta=1.0, gamma=1.0,
                           reduction="mean", *, lanes=512, block_rows=2048):
    """pred, target: (..., 2) arrays with last dim = [I, Q]; returns f32 scalar."""
    if pred.shape != target.shape or pred.shape[-1] != 2:
        raise ValueError("pred/target must have identical (..., 2) shapes")
    if reduction not in ("mean", "sum"):
        raise ValueError("Invalid reduction type. Use 'mean' or 'sum'.")
    if lanes % 128 != 0:
        raise ValueError("lanes must be a multiple of 128 (lane-dense)")

    n_samples = math.prod(pred.shape[:-1])        # B * N
    total = 2 * n_samples                         # interleaved I/Q scalars

    # Copy-free row-major views of the interleaved I/Q stream.  Keep the
    # caller's dtype (bf16 stays bf16 in HBM; kernel upcasts in VMEM).
    p = pred.reshape(-1)
    t = target.reshape(-1)

    C = int(lanes)
    rows_needed = -(-total // C)                  # ceil
    bm_cap = max(8, (int(block_rows) // 8) * 8)   # enforce sublane multiple of 8
    if rows_needed <= bm_cap:
        # Whole problem fits in one block: split into (up to) 2 tiles so both
        # v7x TensorCores get work via the "parallel" grid axis.
        half = -(-rows_needed // 2)
        bm = min(bm_cap, max(8, ((half + 7) // 8) * 8))
    else:
        bm = bm_cap
    rows = ((rows_needed + bm - 1) // bm) * bm
    num_tiles = rows // bm
    padded = rows * C
    if padded != total:
        # Zero padding contributes exactly 0 to every loss term (see kernel).
        p = jnp.pad(p, (0, padded - total))
        t = jnp.pad(t, (0, padded - total))
    p2 = p.reshape(rows, C)
    t2 = t.reshape(rows, C)

    kernel = functools.partial(
        _iq_loss_tile_kernel,
        alpha=float(alpha), beta=float(beta), gamma=float(gamma))

    itemsize = jnp.dtype(pred.dtype).itemsize
    partials = pl.pallas_call(
        kernel,
        out_shape=jax.ShapeDtypeStruct((num_tiles, 8, 128), jnp.float32),
        grid=(num_tiles,),
        in_specs=[pl.BlockSpec((bm, C), lambda i: (i, 0)),
                  pl.BlockSpec((bm, C), lambda i: (i, 0))],
        out_specs=pl.BlockSpec((1, 8, 128), lambda i: (i, 0, 0)),
        compiler_params=pltpu.CompilerParams(
            dimension_semantics=("parallel",),
            # Cap well under v7x's 64 MiB physical VMEM; plenty for
            # 2 inputs x 2 buffers x (bm*C*4B) at the default tile.
            vmem_limit_bytes=48 * 1024 * 1024),
        cost_estimate=pl.CostEstimate(
            flops=int(27 * padded),
            transcendentals=int(2 * padded),
            bytes_accessed=int(2 * padded * itemsize + num_tiles * 8 * 128 * 4)),
    )(p2, t2)

    total_loss = jnp.sum(partials[:, 0, 0])
    if reduction == "mean":
        total_loss = total_loss / jnp.float32(n_samples)
    return total_loss


def _reference(pred, target, alpha=1.0, beta=1.0, gamma=1.0, reduction="mean"):
    I_p, Q_p = pred[..., 0], pred[..., 1]
    I_t, Q_t = target[..., 0], target[..., 1]
    loss_comp = (I_t - I_p) ** 2 + (Q_t - Q_p) ** 2
    A_p = jnp.sqrt(I_p ** 2 + Q_p ** 2)
    A_t = jnp.sqrt(I_t ** 2 + Q_t ** 2)
    loss_amp = (A_t - A_p) ** 2
    theta_p = jnp.arctan2(Q_p, I_p)
    theta_t = jnp.arctan2(Q_t, I_t)
    loss_phase = jnp.sin(theta_t - theta_p) ** 2
    total = alpha * loss_comp + beta * loss_amp + gamma * loss_phase
    return total.mean() if reduction == "mean" else total.sum()


if __name__ == "__main__":
    key = jax.random.PRNGKey(0)

    # (shape, reduction, lanes, block_rows)
    cases = [
        ((2, 8, 2), "mean", 512, 256),      # tiny, single tile, heavy zero padding
        ((2, 1536, 2), "sum", 256, 8),      # 3-tile grid, exact fit (no padding)
        ((3, 1000, 2), "mean", 256, 8),     # 3-tile grid with padded tail
        ((4, 4096, 2), "mean", 512, 2048),  # fits one block -> auto-split to 2 tiles
    ]
    for i, (shape, reduction, lanes, block_rows) in enumerate(cases):
        k1, k2 = jax.random.split(jax.random.fold_in(key, i))
        pred = jax.random.normal(k1, shape, dtype=jnp.float32)
        target = jax.random.normal(k2, shape, dtype=jnp.float32)

        out = iq_component_wise_loss(pred, target,
                                     alpha=1.0, beta=0.5, gamma=2.0,
                                     reduction=reduction,
                                     lanes=lanes, block_rows=block_rows)
        out = jax.block_until_ready(out)

        ref = _reference(pred, target, alpha=1.0, beta=0.5, gamma=2.0,
                         reduction=reduction)
        if not jnp.allclose(out, ref, rtol=5e-5, atol=1e-5):
            raise AssertionError(f"case {i} ({shape}, {reduction}): "
                                 f"kernel={out} ref={ref}")
    print("KERNEL_OK")
</pallas_src>

<mosaic_0001>
module attributes {stable_mosaic.version = 11 : i64} {
  func.func @_iq_loss_tile_kernel(%arg0: i32, %arg1: memref<8x512xf32, #tpu.memory_space<vmem>>, %arg2: memref<8x512xf32, #tpu.memory_space<vmem>>, %arg3: memref<1x8x128xf32, #tpu.memory_space<vmem>>) attributes {dimension_semantics = [#tpu.dimension_semantics<parallel>], iteration_bounds = array<i64: 1>, scalar_prefetch = 0 : i64, scratch_operands = 0 : i64, tpu.core_type = #tpu.core_type<tc>, window_params = [{transform_indices = @transform_0, window_bounds = array<i64: 8, 512>}, {transform_indices = @transform_1, window_bounds = array<i64: 8, 512>}, {transform_indices = @transform_2, window_bounds = array<i64: 1, 8, 128>}]} {
    %c0 = arith.constant 0 : index
    %c0_0 = arith.constant 0 : index
    %0 = vector.load %arg1[%c0, %c0_0] : memref<8x512xf32, #tpu.memory_space<vmem>>, vector<8x512xf32>
    %c0_1 = arith.constant 0 : index
    %c0_2 = arith.constant 0 : index
    %1 = vector.load %arg2[%c0_1, %c0_2] : memref<8x512xf32, #tpu.memory_space<vmem>>, vector<8x512xf32>
    %c511_i32 = arith.constant 511 : i32
    %2 = tpu.dynamic_rotate %0 by %c511_i32 dim 1 : vector<8x512xf32>, i32 -> vector<8x512xf32>
    %c511_i32_3 = arith.constant 511 : i32
    %3 = tpu.dynamic_rotate %1 by %c511_i32_3 dim 1 : vector<8x512xf32>, i32 -> vector<8x512xf32>
    %4 = arith.subf %1, %0 : vector<8x512xf32>
    %5 = arith.mulf %4, %4 : vector<8x512xf32>
    %6 = arith.mulf %0, %0 : vector<8x512xf32>
    %7 = arith.mulf %2, %2 : vector<8x512xf32>
    %8 = arith.addf %6, %7 : vector<8x512xf32>
    %9 = arith.mulf %1, %1 : vector<8x512xf32>
    %10 = arith.mulf %3, %3 : vector<8x512xf32>
    %11 = arith.addf %9, %10 : vector<8x512xf32>
    %cst = arith.constant 1.000000e-30 : f32
    %12 = vector.broadcast %cst : f32 to vector<8x512xf32>
    %13 = arith.maximumf %8, %12 : vector<8x512xf32>
    %14 = math.rsqrt %13 : vector<8x512xf32>
    %cst_4 = arith.constant 1.000000e-30 : f32
    %15 = vector.broadcast %cst_4 : f32 to vector<8x512xf32>
    %16 = arith.maximumf %11, %15 : vector<8x512xf32>
    %17 = math.rsqrt %16 : vector<8x512xf32>
    %18 = arith.mulf %8, %14 : vector<8x512xf32>
    %19 = arith.mulf %11, %17 : vector<8x512xf32>
    %20 = arith.subf %19, %18 : vector<8x512xf32>
    %21 = arith.mulf %20, %20 : vector<8x512xf32>
    %22 = arith.mulf %3, %0 : vector<8x512xf32>
    %23 = arith.mulf %1, %2 : vector<8x512xf32>
    %24 = arith.subf %22, %23 : vector<8x512xf32>
    %25 = arith.mulf %14, %17 : vector<8x512xf32>
    %26 = arith.mulf %24, %25 : vector<8x512xf32>
    %27 = arith.mulf %26, %26 : vector<8x512xf32>
    %28 = tpu.iota {dimensions = array<i32: 1>} : vector<1x512xi32>
    %c2_i32 = arith.constant 2 : i32
    %c0_i32 = arith.constant 0 : i32
    %29 = arith.cmpi eq, %c2_i32, %c0_i32 : i32
    %c1_i32 = arith.constant 1 : i32
    %30 = arith.select %29, %c1_i32, %c2_i32 : i32
    %31 = vector.broadcast %30 : i32 to vector<1x512xi32>
    %32 = arith.remsi %28, %31 : vector<1x512xi32>
    %c0_i32_5 = arith.constant 0 : i32
    %33 = vector.broadcast %c0_i32_5 : i32 to vector<1x512xi32>
    %34 = arith.cmpi ne, %32, %33 : vector<1x512xi32>
    %c0_i32_6 = arith.constant 0 : i32
    %35 = vector.broadcast %c0_i32_6 : i32 to vector<1x512xi32>
    %36 = arith.cmpi slt, %32, %35 : vector<1x512xi32>
    %c0_i32_7 = arith.constant 0 : i32
    %37 = arith.cmpi slt, %30, %c0_i32_7 : i32
    %38 = vector.broadcast %37 : i1 to vector<1x512xi1>
    %39 = vector.broadcast %38 : vector<1x512xi1> to vector<1x512xi1>
    %40 = arith.xori %36, %39 : vector<1x512xi1>
    %41 = arith.andi %40, %34 : vector<1x512xi1>
    %42 = vector.broadcast %30 : i32 to vector<1x512xi32>
    %43 = arith.addi %32, %42 : vector<1x512xi32>
    %44 = arith.select %41, %43, %32 : vector<1x512xi1>, vector<1x512xi32>
    %c0_i32_8 = arith.constant 0 : i32
    %45 = vector.broadcast %c0_i32_8 : i32 to vector<1x512xi32>
    %46 = arith.cmpi eq, %44, %45 : vector<1x512xi32>
    %cst_9 = arith.constant 5.000000e-01 : f32
    %cst_10 = arith.constant 0.000000e+00 : f32
    %47 = vector.broadcast %cst_9 : f32 to vector<1x512xf32>
    %48 = vector.broadcast %cst_10 : f32 to vector<1x512xf32>
    %49 = arith.select %46, %47, %48 : vector<1x512xi1>, vector<1x512xf32>
    %cst_11 = arith.constant 2.000000e+00 : f32
    %cst_12 = arith.constant 0.000000e+00 : f32
    %50 = vector.broadcast %cst_11 : f32 to vector<1x512xf32>
    %51 = vector.broadcast %cst_12 : f32 to vector<1x512xf32>
    %52 = arith.select %46, %50, %51 : vector<1x512xi1>, vector<1x512xf32>
    %cst_13 = arith.constant 1.000000e+00 : f32
    %53 = vector.broadcast %cst_13 : f32 to vector<8x512xf32>
    %54 = arith.mulf %53, %5 : vector<8x512xf32>
    %55 = vector.broadcast %49 : vector<1x512xf32> to vector<8x512xf32>
    %56 = arith.mulf %21, %55 : vector<8x512xf32>
    %57 = arith.addf %54, %56 : vector<8x512xf32>
    %58 = vector.broadcast %52 : vector<1x512xf32> to vector<8x512xf32>
    %59 = arith.mulf %27, %58 : vector<8x512xf32>
    %60 = arith.addf %57, %59 : vector<8x512xf32>
    %61 = vector.shape_cast %60 : vector<8x512xf32> to vector<1x8x512xf32>
    %cst_14 = arith.constant dense<0.000000e+00> : vector<1xf32>
    %62 = vector.multi_reduction <add>, %61, %cst_14 [1, 2] : vector<1x8x512xf32> to vector<1xf32>
    %63 = vector.shape_cast %62 : vector<1xf32> to vector<1x1x1xf32>
    %64 = vector.extract %63[0, 0, 0] : f32 from vector<1x1x1xf32>
    %65 = vector.broadcast %64 : f32 to vector<1x8x128xf32>
    %c0_15 = arith.constant 0 : index
    %c0_16 = arith.constant 0 : index
    %c0_17 = arith.constant 0 : index
    %66 = vector.load %arg3[%c0_15, %c0_16, %c0_17] : memref<1x8x128xf32, #tpu.memory_space<vmem>>, vector<1x8x128xf32>
    tpu.vector_store %arg3[%c0_15, %c0_16, %c0_17], %65 {strides = array<i32>} : memref<1x8x128xf32, #tpu.memory_space<vmem>>, vector<1x8x128xf32>,
    return
  }
  func.func @transform_0(%arg0: i32) -> (i32, i32) {
    %c0_i32 = arith.constant 0 : i32
    %c0_i32_0 = arith.constant 0 : i32
    return %arg0, %c0_i32 : i32, i32
  }
  func.func @transform_1(%arg0: i32) -> (i32, i32) {
    %c0_i32 = arith.constant 0 : i32
    %c0_i32_0 = arith.constant 0 : i32
    return %arg0, %c0_i32 : i32, i32
  }
  func.func @transform_2(%arg0: i32) -> (i32, i32, i32) {
    %c0_i32 = arith.constant 0 : i32
    %c0_i32_0 = arith.constant 0 : i32
    %c0_i32_1 = arith.constant 0 : i32
    return %arg0, %c0_i32, %c0_i32_0 : i32, i32, i32
  }
}

</mosaic_0001>

<llo_original>
// kernel: tpu_custom_call.1
$region0: #{tpu_custom_call.1}
  #allocation0 [shape = 'u32[]', space=smem, size = 0x4, offset = 0x4, fixed_abs, tag = 'smem constant byte address 0x4 - core index']
  #allocation1 [shape = 'u32[144,128]{1,0:T(1,128)}', space=vmem, size = 0x12000, scoped, tag = 'internal scratch']
  %s0 = inlined_call_operand.hbm [shape: f32[8,512], index: 0, kind: input, shape index: {}]
  %s1 = inlined_call_operand.hbm [shape: f32[8,512], index: 1, kind: input, shape index: {}]
  %s2 = inlined_call_operand.hbm [shape: f32[1,8,128], index: 2, kind: output, shape index: {}]
  %s3 = sld [smem:[#allocation0]]
  $region26: #{tpu_custom_call.1} parent=0
    _
  %s5 = ssub.s32 1, %s3
  %s6 = scalar_select 0, %s5, %s3
  $region1: #{tpu_custom_call.1} parent=0
    #allocation2 [shape = 'u8[16384]{0}', space=vmem, size = 0x4000, scoped, tag = 'input window, operand 0, single buffered']
    #allocation3 [shape = 's32[1]{0}', space=sflag, size = 0x4, scoped, tag = 'scoped memory for tpu_custom_call.1']
    #allocation4 [shape = 's32[1]{0}', space=sflag, size = 0x4, scoped, tag = 'scoped memory for tpu_custom_call.1']
    #allocation5 [shape = 'u8[16384]{0}', space=vmem, size = 0x4000, scoped, tag = 'input window, operand 1, single buffered']
    #allocation6 [shape = 's32[1]{0}', space=sflag, size = 0x4, scoped, tag = 'scoped memory for tpu_custom_call.1']
    #allocation7 [shape = 'u8[4096]{0}', space=vmem, size = 0x1000, scoped, tag = 'output window, operand 0, single buffered']
    %7 = vsyncpa [#allocation3], 0
    %8 = vsyncpa [#allocation6], 0
    %9 = vsyncpa [#allocation4], 0
    // Predicated region
    $region2: #{tpu_custom_call.1} parent=1 // pred_check
      _
    $region3: #{tpu_custom_call.1} parent=1 // pred_check_branch
      %11 = sbr.rel (0) target = $region5
    $region4: #{tpu_custom_call.1} parent=1 // pred_region
      %s13 = ssub.s32 512, 512
      %14 = vsyncadd [#allocation3], %s13
      %s16 = sshll.u32 [#allocation2], 4
      %s17 = int_to_ptr.vmem [resolvable:$true] %s16
      %19 = dma.hbm_to_vmem [thread:$0]  %s0, 512, %s17, [#allocation3]
    $region5: #{tpu_custom_call.1} parent=1 // pred_fallthru
      _
    // Predicated region
    $region6: #{tpu_custom_call.1} parent=1 // pred_check
      _
    $region7: #{tpu_custom_call.1} parent=1 // pred_check_branch
      %21 = sbr.rel (0) target = $region9
    $region8: #{tpu_custom_call.1} parent=1 // pred_region
      %s23 = ssub.s32 512, 512
      %24 = vsyncadd [#allocation6], %s23
      %s26 = sshll.u32 [#allocation5], 4
      %s27 = int_to_ptr.vmem [resolvable:$true] %s26
      %29 = dma.hbm_to_vmem [thread:$0]  %s1, 512, %s27, [#allocation6]
    $region9: #{tpu_custom_call.1} parent=1 // pred_fallthru
      _
    // Predicated region
    $region10: #{tpu_custom_call.1} parent=1 // pred_check
      _
    $region11: #{tpu_custom_call.1} parent=1 // pred_check_branch
      %31 = sbr.rel (0) target = $region13
    $region12: #{tpu_custom_call.1} parent=1 // pred_region
      %32 = dma.done [#allocation3], 512
    $region13: #{tpu_custom_call.1} parent=1 // pred_fallthru
      _
    // Predicated region
    $region14: #{tpu_custom_call.1} parent=1 // pred_check
      _
    $region15: #{tpu_custom_call.1} parent=1 // pred_check_branch
      %34 = sbr.rel (0) target = $region17
    $region16: #{tpu_custom_call.1} parent=1 // pred_region
      %35 = dma.done [#allocation6], 512
    $region17: #{tpu_custom_call.1} parent=1 // pred_fallthru
      _
    %v36 = vld [vmem:[#allocation2] sm:$0xff]
    %v37 = vld [vmem:[#allocation2 + $0x8] sm:$0xff]
    %v38 = vld [vmem:[#allocation2 + $0x10] sm:$0xff]
    %v39 = vld [vmem:[#allocation2 + $0x18] sm:$0xff]
    %v40 = vld [vmem:[#allocation5] sm:$0xff]
    %v41 = vld [vmem:[#allocation5 + $0x8] sm:$0xff]
    %v42 = vld [vmem:[#allocation5 + $0x10] sm:$0xff]
    %v43 = vld [vmem:[#allocation5 + $0x18] sm:$0xff]
    %44 = vrot.lane.b32.xlu0 %v36, 127
    %v45 = vpop.permute.xlu0 %44
    %46 = vrot.lane.b32.xlu0 %v37, 127
    %v47 = vpop.permute.xlu0 %46
    %48 = vrot.lane.b32.xlu0 %v38, 127
    %v49 = vpop.permute.xlu0 %48
    %50 = vrot.lane.b32.xlu0 %v39, 127
    %v51 = vpop.permute.xlu0 %50
    %v52 = vlaneseq
    %v53 = vand.u32 %v52, 127
    %vm54 = vcmp.lt.s32.totalorder %v53, 127
    %v55 = vsel %vm54, %v49, %v51
    %v56 = vsel %vm54, %v47, %v49
    %v57 = vsel %vm54, %v45, %v47
    %v58 = vsel %vm54, %v51, %v45
    %59 = vrot.lane.b32.xlu0 %v40, 127
    %v60 = vpop.permute.xlu0 %59
    %61 = vrot.lane.b32.xlu0 %v41, 127
    %v62 = vpop.permute.xlu0 %61
    %63 = vrot.lane.b32.xlu0 %v42, 127
    %v64 = vpop.permute.xlu0 %63
    %65 = vrot.lane.b32.xlu0 %v43, 127
    %v66 = vpop.permute.xlu0 %65
    %v67 = vsel %vm54, %v64, %v66
    %v68 = vsel %vm54, %v62, %v64
    %v69 = vsel %vm54, %v60, %v62
    %v70 = vsel %vm54, %v66, %v60
    %v71 = vsub.f32 %v40, %v36
    %v72 = vsub.f32 %v41, %v37
    %v73 = vsub.f32 %v42, %v38
    %v74 = vsub.f32 %v43, %v39
    %v75 = vmul.f32 %v71, %v71
    %v76 = vmul.f32 %v72, %v72
    %v77 = vmul.f32 %v73, %v73
    %v78 = vmul.f32 %v74, %v74
    %v79 = vmul.f32 %v36, %v36
    %v80 = vmul.f32 %v37, %v37
    %v81 = vmul.f32 %v38, %v38
    %v82 = vmul.f32 %v39, %v39
    %v83 = vmul.f32 %v57, %v57
    %v84 = vmul.f32 %v56, %v56
    %v85 = vmul.f32 %v55, %v55
    %v86 = vmul.f32 %v58, %v58
    %v87 = vadd.f32 %v79, %v83
    %v88 = vadd.f32 %v80, %v84
    %v89 = vadd.f32 %v81, %v85
    %v90 = vadd.f32 %v82, %v86
    %v91 = vmul.f32 %v40, %v40
    %v92 = vmul.f32 %v41, %v41
    %v93 = vmul.f32 %v42, %v42
    %v94 = vmul.f32 %v43, %v43
    %v95 = vmul.f32 %v69, %v69
    %v96 = vmul.f32 %v68, %v68
    %v97 = vmul.f32 %v67, %v67
    %v98 = vmul.f32 %v70, %v70
    %v99 = vadd.f32 %v91, %v95
    %v100 = vadd.f32 %v92, %v96
    %v101 = vadd.f32 %v93, %v97
    %v102 = vadd.f32 %v94, %v98
    %v103 = vmax.f32 %v87, 1e-30
    %v104 = vmax.f32 %v88, 1e-30
    %v105 = vmax.f32 %v89, 1e-30
    %v106 = vmax.f32 %v90, 1e-30
    %v107 = vrsqrt.pop %v103
    %v108 = vrsqrt.pop %v104
    %v109 = vrsqrt.pop %v105
    %v110 = vrsqrt.pop %v106
    %v111 = vmax.f32 %v99, 1e-30
    %v112 = vmax.f32 %v100, 1e-30
    %v113 = vmax.f32 %v101, 1e-30
    %v114 = vmax.f32 %v102, 1e-30
    %v115 = vrsqrt.pop %v111
    %v116 = vrsqrt.pop %v112
    %v117 = vrsqrt.pop %v113
    %v118 = vrsqrt.pop %v114
    %v119 = vmul.f32 %v87, %v107
    %v120 = vmul.f32 %v88, %v108
    %v121 = vmul.f32 %v89, %v109
    %v122 = vmul.f32 %v90, %v110
    %v123 = vmul.f32 %v99, %v115
    %v124 = vmul.f32 %v100, %v116
    %v125 = vmul.f32 %v101, %v117
    %v126 = vmul.f32 %v102, %v118
    %v127 = vsub.f32 %v123, %v119
    %v128 = vsub.f32 %v124, %v120
    %v129 = vsub.f32 %v125, %v121
    %v130 = vsub.f32 %v126, %v122
    %v131 = vmul.f32 %v127, %v127
    %v132 = vmul.f32 %v128, %v128
    %v133 = vmul.f32 %v129, %v129
    %v134 = vmul.f32 %v130, %v130
    %v135 = vmul.f32 %v69, %v36
    %v136 = vmul.f32 %v68, %v37
    %v137 = vmul.f32 %v67, %v38
    %v138 = vmul.f32 %v70, %v39
    %v139 = vmul.f32 %v40, %v57
    %v140 = vmul.f32 %v41, %v56
    %v141 = vmul.f32 %v42, %v55
    %v142 = vmul.f32 %v43, %v58
    %v143 = vsub.f32 %v135, %v139
    %v144 = vsub.f32 %v136, %v140
    %v145 = vsub.f32 %v137, %v141
    %v146 = vsub.f32 %v138, %v142
    %v147 = vmul.f32 %v107, %v115
    %v148 = vmul.f32 %v108, %v116
    %v149 = vmul.f32 %v109, %v117
    %v150 = vmul.f32 %v110, %v118
    %v151 = vmul.f32 %v143, %v147
    %v152 = vmul.f32 %v144, %v148
    %v153 = vmul.f32 %v145, %v149
    %v154 = vmul.f32 %v146, %v150
    %v155 = vmul.f32 %v151, %v151
    %v156 = vmul.f32 %v152, %v152
    %v157 = vmul.f32 %v153, %v153
    %v158 = vmul.f32 %v154, %v154
    %v159 = vadd.s32 %v53, 128
    %v160 = vadd.s32 %v53, 256
    %v161 = vadd.s32 %v53, 384
    %vm162 = vcmp.lt.s32.totalorder %v53, 0
    %v163 = vsub.s32 0, %v53
    %v164 = vsel %vm162, %v163, %v53
    %v165 = vshrl.u32 %v164, 1
    %v166 = vand.u32 %v164, 1
    %v167 = vsub.s32 0, %v166
    %v168 = vsel %vm162, %v167, %v166
    %vm169 = vcmp.lt.s32.totalorder %v159, 0
    %v170 = vsub.s32 0, %v159
    %v171 = vsel %vm169, %v170, %v159
    %v172 = vshrl.u32 %v171, 1
    %v173 = vand.u32 %v171, 1
    %v174 = vsub.s32 0, %v173
    %v175 = vsel %vm169, %v174, %v173
    %vm176 = vcmp.lt.s32.totalorder %v160, 0
    %v177 = vsub.s32 0, %v160
    %v178 = vsel %vm176, %v177, %v160
    %v179 = vshrl.u32 %v178, 1
    %v180 = vand.u32 %v178, 1
    %v181 = vsub.s32 0, %v180
    %v182 = vsel %vm176, %v181, %v180
    %vm183 = vcmp.lt.s32.totalorder %v161, 0
    %v184 = vsub.s32 0, %v161
    %v185 = vsel %vm183, %v184, %v161
    %v186 = vshrl.u32 %v185, 1
    %v187 = vand.u32 %v185, 1
    %v188 = vsub.s32 0, %v187
    %v189 = vsel %vm183, %v188, %v187
    %vm190 = vcmp.ne.s32.totalorder %v168, 0
    %vm191 = vcmp.ne.s32.totalorder %v175, 0
    %vm192 = vcmp.ne.s32.totalorder %v182, 0
    %vm193 = vcmp.ne.s32.totalorder %v189, 0
    %vm194 = vcmp.lt.s32.totalorder %v168, 0
    %vm195 = vcmp.lt.s32.totalorder %v175, 0
    %vm196 = vcmp.lt.s32.totalorder %v182, 0
    %vm197 = vcmp.lt.s32.totalorder %v189, 0
    %vm198 = vmand %vm194, %vm190
    %vm199 = vmand %vm195, %vm191
    %vm200 = vmand %vm196, %vm192
    %vm201 = vmand %vm197, %vm193
    %v202 = vadd.s32 %v168, 2
    %v203 = vadd.s32 %v175, 2
    %v204 = vadd.s32 %v182, 2
    %v205 = vadd.s32 %v189, 2
    %v206 = vsel %vm198, %v202, %v168
    %v207 = vsel %vm199, %v203, %v175
    %v208 = vsel %vm200, %v204, %v182
    %v209 = vsel %vm201, %v205, %v189
    %vm210 = vcmp.eq.s32.totalorder %v206, 0
    %vm211 = vcmp.eq.s32.totalorder %v207, 0
    %vm212 = vcmp.eq.s32.totalorder %v208, 0
    %vm213 = vcmp.eq.s32.totalorder %v209, 0
    %v214 = vsel %vm210, 0.5, 0.0
    %v215 = vsel %vm211, 0.5, 0.0
    %v216 = vsel %vm212, 0.5, 0.0
    %v217 = vsel %vm213, 0.5, 0.0
    %v218 = vsel %vm210, 2.0, 0.0
    %v219 = vsel %vm211, 2.0, 0.0
    %v220 = vsel %vm212, 2.0, 0.0
    %v221 = vsel %vm213, 2.0, 0.0
    %v222 = vmul.f32 %v131, %v214
    %v223 = vmul.f32 %v132, %v215
    %v224 = vmul.f32 %v133, %v216
    %v225 = vmul.f32 %v134, %v217
    %v226 = vadd.f32 %v75, %v222
    %v227 = vadd.f32 %v76, %v223
    %v228 = vadd.f32 %v77, %v224
    %v229 = vadd.f32 %v78, %v225
    %v230 = vmul.f32 %v155, %v218
    %v231 = vmul.f32 %v156, %v219
    %v232 = vmul.f32 %v157, %v220
    %v233 = vmul.f32 %v158, %v221
    %v234 = vadd.f32 %v226, %v230
    %v235 = vadd.f32 %v227, %v231
    %v236 = vadd.f32 %v228, %v232
    %v237 = vadd.f32 %v229, %v233
    %v238 = vadd.f32 %v234, %v235
    %v239 = vadd.f32 %v238, %v236
    %v240 = vadd.f32 %v239, %v237
    %241 = vadd.xlane.f32.xlu0 %v240
    %v242 = vpop.xlane.xlu0 %241
    %v243 = vrot.slane %v242, 4
    %v244 = vadd.f32 %v242, %v243
    %v245 = vrot.slane %v244, 2
    %v246 = vadd.f32 %v244, %v245
    %v247 = vrot.slane %v246, 1
    %v248 = vadd.f32 %v246, %v247
    %s249 = vtos %v248
    %v250 = vstv %s249
    %251 = vst [vmem:[#allocation7] sm:$0xff] %v250
    // Predicated region
    $region18: #{tpu_custom_call.1} parent=1 // pred_check
      _
    $region19: #{tpu_custom_call.1} parent=1 // pred_check_branch
      %253 = sbr.rel (0) target = $region21
    $region20: #{tpu_custom_call.1} parent=1 // pred_region
      %s255 = ssub.s32 128, 128
      %256 = vsyncadd [#allocation4], %s255
      %s258 = sshll.u32 [#allocation7], 4
      %s259 = int_to_ptr.vmem [resolvable:$true] %s258
      %261 = dma.vmem_to_hbm [thread:$0]  %s259, 128, %s2, [#allocation4]
    $region21: #{tpu_custom_call.1} parent=1 // pred_fallthru
      _
    // Predicated region
    $region22: #{tpu_custom_call.1} parent=1 // pred_check
      _
    $region23: #{tpu_custom_call.1} parent=1 // pred_check_branch
      %263 = sbr.rel (0) target = $region25
    $region24: #{tpu_custom_call.1} parent=1 // pred_region
      %264 = dma.done [#allocation4], 128
    $region25: #{tpu_custom_call.1} parent=1 // pred_fallthru
      _
    %265 = vsyncpa [#allocation3], 1
    %266 = vsyncpa [#allocation6], 1
    %267 = vsyncpa [#allocation4], 1

</llo_original>
